<compile_context>
chip_gen: v7x
topology: tpu7x:2x2x1
jax: 0.10.0
libtpu: 0.0.40
codegen_flags: <defaults>
</compile_context>

<pallas_src>
import math
import functools

import jax
import jax.numpy as jnp
from jax import lax
from jax.experimental import pallas as pl
from jax.experimental.pallas import tpu as pltpu


# ----------------------------------------------------------------------------
# ALiBi slopes (same math as the PyTorch reference)
# ----------------------------------------------------------------------------
def get_alibi_slopes(total_num_heads: int) -> jnp.ndarray:
    closest_power_of_2 = 2 ** math.floor(math.log2(total_num_heads))
    base = 2 ** (-(2 ** (-(math.log2(closest_power_of_2) - 3))))
    powers = jnp.arange(1, 1 + closest_power_of_2, dtype=jnp.float32)
    slopes = jnp.power(jnp.float32(base), powers)
    if closest_power_of_2 != total_num_heads:
        extra_base = 2 ** (-(2 ** (-(math.log2(2 * closest_power_of_2) - 3))))
        num_remaining = min(closest_power_of_2,
                            total_num_heads - closest_power_of_2)
        extra_powers = jnp.arange(1, 1 + 2 * num_remaining, 2,
                                  dtype=jnp.float32)
        slopes = jnp.concatenate(
            [slopes, jnp.power(jnp.float32(extra_base), extra_powers)])
    return slopes.astype(jnp.float32)


# ----------------------------------------------------------------------------
# Tile-size helper: largest tile <= target that divides `dim`, preferring
# multiples of `align` (8/16 for sublane axes depending on dtype, 128 for lane
# axes).  Small demo shapes fall through to full-array tiles (always legal).
# ----------------------------------------------------------------------------
def _fit_tile(dim: int, target: int, align: int) -> int:
    if dim <= target:
        return dim
    t = (target // align) * align
    while t >= align:
        if dim % t == 0:
            return t
        t -= align
    for t in range(min(target, dim), 0, -1):
        if dim % t == 0:
            return t
    return dim


def _row_align(dtype) -> int:
    # bf16/f16 pack two rows per sublane -> prefer 16-row granularity.
    return 16 if jnp.dtype(dtype).itemsize < 4 else 8


# ----------------------------------------------------------------------------
# LayerNorm (row-tiled, VMEM-budgeted so it fits v7x at hidden=14336)
# ----------------------------------------------------------------------------
def layernorm_kernel(x_ref, g_ref, b_ref, o_ref, *, eps):
    x = x_ref[...].astype(jnp.float32)
    mean = jnp.mean(x, axis=-1, keepdims=True)
    var = jnp.mean(jnp.square(x - mean), axis=-1, keepdims=True)
    y = (x - mean) * lax.rsqrt(var + eps)
    y = y * g_ref[...].astype(jnp.float32) + b_ref[...].astype(jnp.float32)
    o_ref[...] = y.astype(o_ref.dtype)


def layernorm(x, gamma, beta, eps, *, vmem_budget_bytes=24 << 20):
    m, h = x.shape
    itemsize = jnp.dtype(x.dtype).itemsize
    align = _row_align(x.dtype)
    # in + out blocks, double-buffered -> ~4 live (tr, h) blocks.
    max_rows = max(align, vmem_budget_bytes // (4 * h * itemsize))
    target = max(align, min(512, (max_rows // align) * align))
    tr = _fit_tile(m, target, align)
    return pl.pallas_call(
        functools.partial(layernorm_kernel, eps=eps),
        out_shape=jax.ShapeDtypeStruct((m, h), x.dtype),
        grid=(m // tr,),
        in_specs=[
            pl.BlockSpec((tr, h), lambda i: (i, 0)),
            pl.BlockSpec((1, h), lambda i: (0, 0)),
            pl.BlockSpec((1, h), lambda i: (0, 0)),
        ],
        out_specs=pl.BlockSpec((tr, h), lambda i: (i, 0)),
        compiler_params=pltpu.CompilerParams(
            dimension_semantics=("parallel",),
            vmem_limit_bytes=48 << 20),
    )(x, gamma.reshape(1, h), beta.reshape(1, h))


# ----------------------------------------------------------------------------
# Tiled matmul with fused bias / exact-GELU / residual epilogue
# ----------------------------------------------------------------------------
def _linear_kernel(x_ref, w_ref, b_ref, *rest, act, has_residual):
    if has_residual:
        res_ref, o_ref, acc_ref = rest
    else:
        o_ref, acc_ref = rest

    k = pl.program_id(2)

    @pl.when(k == 0)
    def _():
        acc_ref[...] = jnp.zeros_like(acc_ref)

    # Native-dtype (bf16-ready) MXU operands, fp32 accumulation.
    acc_ref[...] += jnp.dot(x_ref[...], w_ref[...],
                            preferred_element_type=jnp.float32)

    @pl.when(k == pl.num_programs(2) - 1)
    def _():
        # Bias added exactly once per output tile (not inside the K loop).
        y = acc_ref[...] + b_ref[...].astype(jnp.float32)
        if act == "gelu":
            # vLLM get_act_fn('gelu') -> nn.GELU() -> exact (erf) GELU.
            y = jax.nn.gelu(y, approximate=False)
        if has_residual:
            y = y + res_ref[...].astype(jnp.float32)
        o_ref[...] = y.astype(o_ref.dtype)


def linear(x, w, b, *, act=None, residual=None,
           tm_target=512, tn_target=512, tk_target=512):
    m, kdim = x.shape
    n = w.shape[1]
    tm = _fit_tile(m, tm_target, _row_align(x.dtype))
    tn = _fit_tile(n, tn_target, 128)
    tk = _fit_tile(kdim, tk_target, 128)
    grid = (m // tm, n // tn, kdim // tk)

    in_specs = [
        pl.BlockSpec((tm, tk), lambda i, j, k: (i, k)),
        pl.BlockSpec((tk, tn), lambda i, j, k: (k, j)),
        pl.BlockSpec((1, tn), lambda i, j, k: (0, j)),
    ]
    args = [x, w, b.reshape(1, n)]
    has_residual = residual is not None
    if has_residual:
        in_specs.append(pl.BlockSpec((tm, tn), lambda i, j, k: (i, j)))
        args.append(residual)

    return pl.pallas_call(
        functools.partial(_linear_kernel, act=act, has_residual=has_residual),
        out_shape=jax.ShapeDtypeStruct((m, n), x.dtype),
        grid=grid,
        in_specs=in_specs,
        out_specs=pl.BlockSpec((tm, tn), lambda i, j, k: (i, j)),
        scratch_shapes=[pltpu.VMEM((tm, tn), jnp.float32)],
        compiler_params=pltpu.CompilerParams(
            dimension_semantics=("parallel", "parallel", "arbitrary"),
            vmem_limit_bytes=48 << 20),
    )(*args)


# ----------------------------------------------------------------------------
# Flash-style causal attention with ALiBi, reading Q/K/V directly out of the
# fused (S, 3H) qkv activation and writing a lane-dense (S, H) output.
# ----------------------------------------------------------------------------
def flash_attn_kernel(slopes_ref, q_ref, k_ref, v_ref, o_ref,
                      m_sc, l_sc, acc_sc, qs_sc, bias_sc, *, scaling, tq, tk):
    h = pl.program_id(0)
    qi = pl.program_id(1)
    ki = pl.program_id(2)

    q_start = qi * tq
    k_start = ki * tk

    @pl.when(ki == 0)
    def _():
        m_sc[...] = jnp.full_like(m_sc, -jnp.inf)
        l_sc[...] = jnp.zeros_like(l_sc)
        acc_sc[...] = jnp.zeros_like(acc_sc)
        # Pre-scale Q once per (head, q-tile); keeps the (tq,tk) score path free
        # of the `* scaling` VPU pass on every kv step.
        qs_sc[...] = (q_ref[...].astype(jnp.float32) * scaling).astype(qs_sc.dtype)
        # Local ALiBi bias slope*(col-row) for this tile geometry; per kv step
        # only the scalar offset slope*(k_start-q_start) is added.
        row_l = lax.broadcasted_iota(jnp.int32, (tq, tk), 0)
        col_l = lax.broadcasted_iota(jnp.int32, (tq, tk), 1)
        slope = slopes_ref[h]
        bias_sc[...] = slope * (col_l - row_l).astype(jnp.float32)

    # Skip kv tiles that lie entirely in the causal future of this q tile.
    # (Their DMA is also skipped via the clamped K/V index maps.)
    @pl.when(k_start <= q_start + (tq - 1))
    def _():
        kb = k_ref[...]           # (tk, D), native dtype
        vb = v_ref[...]           # (tk, D)

        s = lax.dot_general(qs_sc[...], kb, (((1,), (1,)), ((), ())),
                            preferred_element_type=jnp.float32)

        slope = slopes_ref[h]
        offset = (k_start - q_start).astype(jnp.float32)
        bias = bias_sc[...] + slope * offset      # slope*(col-row), full matrix
        # slope > 0, so (col <= row)  <=>  (bias <= 0).  Mask stays in fp32.
        s = jnp.where(bias <= 0.0, s + bias, jnp.float32(-1e30))

        m_prev = m_sc[...]
        m_new = jnp.maximum(m_prev, jnp.max(s, axis=-1, keepdims=True))
        alpha = jnp.exp(m_prev - m_new)
        p = jnp.exp(s - m_new)
        l_sc[...] = alpha * l_sc[...] + jnp.sum(p, axis=-1, keepdims=True)
        acc_sc[...] = alpha * acc_sc[...] + jnp.dot(
            p.astype(vb.dtype), vb, preferred_element_type=jnp.float32)
        m_sc[...] = m_new

    @pl.when(ki == pl.num_programs(2) - 1)
    def _():
        inv_l = pl.reciprocal(l_sc[...], approx=True)   # EUP, not VPU divide
        o_ref[...] = (acc_sc[...] * inv_l).astype(o_ref.dtype)


def flash_alibi_attention(qkv, slopes, scaling, *, num_heads, head_dim,
                          tq_target=512, tk_target=512):
    s = qkv.shape[0]
    hsz = num_heads * head_dim
    assert qkv.shape[1] == 3 * hsz
    # TODO(synk): for head_dim == 64 pack two heads per grid step to keep the
    # lane axis 128-dense; current per-head BlockSpecs require head_dim % 128 == 0.
    assert head_dim % 128 == 0, "per-head BlockSpecs need head_dim % 128 == 0"

    dt = qkv.dtype
    align = _row_align(dt)
    tq = _fit_tile(s, tq_target, align)
    tk = _fit_tile(s, tk_target, align)
    grid = (num_heads, s // tq, s // tk)

    def q_map(h, i, j):
        return (i, h)

    def kv_causal_row(i, j):
        # Last kv block this q tile can causally see; clamping makes the block
        # index repeat past the boundary so Pallas never re-DMAs dead tiles.
        return jnp.minimum(j, (i * tq + tq - 1) // tk)

    def k_map(h, i, j):
        return (kv_causal_row(i, j), num_heads + h)

    def v_map(h, i, j):
        return (kv_causal_row(i, j), 2 * num_heads + h)

    def o_map(h, i, j):
        return (i, h)

    return pl.pallas_call(
        functools.partial(flash_attn_kernel, scaling=scaling, tq=tq, tk=tk),
        out_shape=jax.ShapeDtypeStruct((s, hsz), dt),
        grid=grid,
        in_specs=[
            pl.BlockSpec(memory_space=pltpu.MemorySpace.SMEM),   # slopes
            pl.BlockSpec((tq, head_dim), q_map),                 # Q columns of qkv
            pl.BlockSpec((tk, head_dim), k_map),                 # K columns of qkv
            pl.BlockSpec((tk, head_dim), v_map),                 # V columns of qkv
        ],
        out_specs=pl.BlockSpec((tq, head_dim), o_map),
        scratch_shapes=[
            pltpu.VMEM((tq, 1), jnp.float32),          # running max
            pltpu.VMEM((tq, 1), jnp.float32),          # running denom
            pltpu.VMEM((tq, head_dim), jnp.float32),   # output accumulator
            pltpu.VMEM((tq, head_dim), dt),            # pre-scaled Q tile
            pltpu.VMEM((tq, tk), jnp.float32),         # local ALiBi bias
        ],
        compiler_params=pltpu.CompilerParams(
            dimension_semantics=("parallel", "parallel", "arbitrary"),
            vmem_limit_bytes=48 << 20),
    )(slopes, qkv, qkv, qkv)


# ----------------------------------------------------------------------------
# BloomBlock forward
# ----------------------------------------------------------------------------
def bloom_block_forward(hidden_states, params, *, num_heads, eps,
                        apply_residual_connection_post_layernorm=False):
    s_orig, h = hidden_states.shape
    head_dim = h // num_heads
    scaling = head_dim ** (-0.5)

    # Pad the token axis to a friendly sublane multiple (padded rows are causally
    # inert: they sit at the end, so real queries never attend to them).
    align = _row_align(hidden_states.dtype)
    pad = (-s_orig) % align
    if pad:
        hidden_states = jnp.pad(hidden_states, ((0, pad), (0, 0)))
    s = hidden_states.shape[0]

    # input_layernorm
    ln_out = layernorm(hidden_states, params["ln1_g"], params["ln1_b"], eps)
    residual = ln_out if apply_residual_connection_post_layernorm else hidden_states

    # --- self attention ---
    qkv = linear(ln_out, params["qkv_w"], params["qkv_b"])        # (S, 3H)

    # TODO(synk): paged KV-cache write/read (k_cache, v_cache, block tables,
    # cache_event) is vLLM serving plumbing; prefill causal attention with
    # ALiBi is computed instead.
    attn = flash_alibi_attention(qkv, params["alibi_slopes"], scaling,
                                 num_heads=num_heads, head_dim=head_dim)  # (S, H)

    # dense projection with the residual add fused into its epilogue
    attn_out = linear(attn, params["dense_w"], params["dense_b"],
                      residual=residual)

    # post_attention_layernorm
    ln2_out = layernorm(attn_out, params["ln2_g"], params["ln2_b"], eps)
    residual2 = ln2_out if apply_residual_connection_post_layernorm else attn_out

    # --- MLP --- (GELU fused into fc1 epilogue, residual fused into fc2 epilogue)
    h4 = linear(ln2_out, params["fc1_w"], params["fc1_b"], act="gelu")
    out = linear(h4, params["fc2_w"], params["fc2_b"], residual=residual2)

    if pad:
        out = out[:s_orig]
    return out


# ----------------------------------------------------------------------------
# Deterministic parameter init + demo
# ----------------------------------------------------------------------------
def init_params(key, hidden_size, num_heads, dtype=jnp.bfloat16):
    ks = jax.random.split(key, 8)
    std = 0.02
    return {
        "ln1_g": jnp.ones((hidden_size,), dtype),
        "ln1_b": jnp.zeros((hidden_size,), dtype),
        "ln2_g": jnp.ones((hidden_size,), dtype),
        "ln2_b": jnp.zeros((hidden_size,), dtype),
        "qkv_w": (std * jax.random.normal(ks[0], (hidden_size, 3 * hidden_size))).astype(dtype),
        "qkv_b": (std * jax.random.normal(ks[1], (3 * hidden_size,))).astype(dtype),
        "dense_w": (std * jax.random.normal(ks[2], (hidden_size, hidden_size))).astype(dtype),
        "dense_b": (std * jax.random.normal(ks[3], (hidden_size,))).astype(dtype),
        "fc1_w": (std * jax.random.normal(ks[4], (hidden_size, 4 * hidden_size))).astype(dtype),
        "fc1_b": (std * jax.random.normal(ks[5], (4 * hidden_size,))).astype(dtype),
        "fc2_w": (std * jax.random.normal(ks[6], (4 * hidden_size, hidden_size))).astype(dtype),
        "fc2_b": (std * jax.random.normal(ks[7], (hidden_size,))).astype(dtype),
        "alibi_slopes": get_alibi_slopes(num_heads),   # fp32, read from SMEM
    }


if __name__ == "__main__":
    # Small config consistent with BloomConfig semantics: layer_norm_epsilon=1e-5,
    # apply_residual_connection_post_layernorm=False.  head_dim=128 (as in real
    # BLOOM) keeps the per-head lane axis dense; bf16 weights/activations use the
    # native MXU path while accumulation / softmax / LN stay fp32.
    seq_len = 16
    hidden_size = 256
    num_heads = 2          # head_dim = 128
    eps = 1e-5
    dtype = jnp.bfloat16

    key = jax.random.PRNGKey(0)
    k_param, k_x = jax.random.split(key)
    params = init_params(k_param, hidden_size, num_heads, dtype=dtype)

    position_ids = jnp.arange(seq_len, dtype=jnp.int32)  # unused (as in reference)
    hidden_states = jax.random.normal(k_x, (seq_len, hidden_size),
                                      dtype=jnp.float32).astype(dtype)

    out = bloom_block_forward(
        hidden_states, params,
        num_heads=num_heads, eps=eps,
        apply_residual_connection_post_layernorm=False)
    out = jax.block_until_ready(out)
    assert out.shape == (seq_len, hidden_size)
    assert bool(jnp.all(jnp.isfinite(out.astype(jnp.float32))))
    print("KERNEL_OK")
</pallas_src>

<mosaic_0001>
module attributes {stable_mosaic.version = 11 : i64} {
  func.func @layernorm_kernel(%arg0: i32, %arg1: memref<16x256xbf16, #tpu.memory_space<vmem>>, %arg2: memref<1x256xbf16, #tpu.memory_space<vmem>>, %arg3: memref<1x256xbf16, #tpu.memory_space<vmem>>, %arg4: memref<16x256xbf16, #tpu.memory_space<vmem>>) attributes {dimension_semantics = [#tpu.dimension_semantics<parallel>], iteration_bounds = array<i64: 1>, scalar_prefetch = 0 : i64, scratch_operands = 0 : i64, tpu.core_type = #tpu.core_type<tc>, window_params = [{transform_indices = @transform_0, window_bounds = array<i64: 16, 256>}, {pipeline_mode = #tpu.pipeline_mode<synchronous>, transform_indices = @transform_1, window_bounds = array<i64: 1, 256>}, {pipeline_mode = #tpu.pipeline_mode<synchronous>, transform_indices = @transform_2, window_bounds = array<i64: 1, 256>}, {transform_indices = @transform_3, window_bounds = array<i64: 16, 256>}]} {
    %c0 = arith.constant 0 : index
    %c0_0 = arith.constant 0 : index
    %0 = vector.load %arg1[%c0, %c0_0] : memref<16x256xbf16, #tpu.memory_space<vmem>>, vector<16x256xbf16>
    %1 = arith.extf %0 : vector<16x256xbf16> to vector<16x256xf32>
    %cst = arith.constant dense<0.000000e+00> : vector<16xf32>
    %2 = vector.multi_reduction <add>, %1, %cst [1] : vector<16x256xf32> to vector<16xf32>
    %3 = vector.shape_cast %2 : vector<16xf32> to vector<16x1xf32>
    %cst_1 = arith.constant 2.560000e+02 : f32
    %4 = vector.broadcast %cst_1 : f32 to vector<16x1xf32>
    %5 = arith.divf %3, %4 : vector<16x1xf32>
    %6 = vector.broadcast %5 : vector<16x1xf32> to vector<16x256xf32>
    %7 = arith.subf %1, %6 : vector<16x256xf32>
    %8 = arith.mulf %7, %7 : vector<16x256xf32>
    %cst_2 = arith.constant dense<0.000000e+00> : vector<16xf32>
    %9 = vector.multi_reduction <add>, %8, %cst_2 [1] : vector<16x256xf32> to vector<16xf32>
    %10 = vector.shape_cast %9 : vector<16xf32> to vector<16x1xf32>
    %cst_3 = arith.constant 2.560000e+02 : f32
    %11 = vector.broadcast %cst_3 : f32 to vector<16x1xf32>
    %12 = arith.divf %10, %11 : vector<16x1xf32>
    %13 = vector.broadcast %5 : vector<16x1xf32> to vector<16x256xf32>
    %14 = arith.subf %1, %13 : vector<16x256xf32>
    %cst_4 = arith.constant 9.99999974E-6 : f32
    %15 = vector.broadcast %cst_4 : f32 to vector<16x1xf32>
    %16 = arith.addf %12, %15 : vector<16x1xf32>
    %17 = math.rsqrt %16 : vector<16x1xf32>
    %18 = vector.broadcast %17 : vector<16x1xf32> to vector<16x256xf32>
    %19 = arith.mulf %14, %18 : vector<16x256xf32>
    %c0_5 = arith.constant 0 : index
    %c0_6 = arith.constant 0 : index
    %20 = vector.load %arg2[%c0_5, %c0_6] : memref<1x256xbf16, #tpu.memory_space<vmem>>, vector<1x256xbf16>
    %21 = arith.extf %20 : vector<1x256xbf16> to vector<1x256xf32>
    %22 = vector.broadcast %21 : vector<1x256xf32> to vector<16x256xf32>
    %23 = arith.mulf %19, %22 : vector<16x256xf32>
    %c0_7 = arith.constant 0 : index
    %c0_8 = arith.constant 0 : index
    %24 = vector.load %arg3[%c0_7, %c0_8] : memref<1x256xbf16, #tpu.memory_space<vmem>>, vector<1x256xbf16>
    %25 = arith.extf %24 : vector<1x256xbf16> to vector<1x256xf32>
    %26 = vector.broadcast %25 : vector<1x256xf32> to vector<16x256xf32>
    %27 = arith.addf %23, %26 : vector<16x256xf32>
    %28 = arith.truncf %27 : vector<16x256xf32> to vector<16x256xbf16>
    %c0_9 = arith.constant 0 : index
    %c0_10 = arith.constant 0 : index
    %29 = vector.load %arg4[%c0_9, %c0_10] : memref<16x256xbf16, #tpu.memory_space<vmem>>, vector<16x256xbf16>
    tpu.vector_store %arg4[%c0_9, %c0_10], %28 {strides = array<i32>} : memref<16x256xbf16, #tpu.memory_space<vmem>>, vector<16x256xbf16>,
    return
  }
  func.func @transform_0(%arg0: i32) -> (i32, i32) {
    %c0_i32 = arith.constant 0 : i32
    %c0_i32_0 = arith.constant 0 : i32
    return %arg0, %c0_i32 : i32, i32
  }
  func.func @transform_1(%arg0: i32) -> (i32, i32) {
    %c0_i32 = arith.constant 0 : i32
    %c0_i32_0 = arith.constant 0 : i32
    %c0_i32_1 = arith.constant 0 : i32
    return %c0_i32, %c0_i32_0 : i32, i32
  }
  func.func @transform_2(%arg0: i32) -> (i32, i32) {
    %c0_i32 = arith.constant 0 : i32
    %c0_i32_0 = arith.constant 0 : i32
    %c0_i32_1 = arith.constant 0 : i32
    return %c0_i32, %c0_i32_0 : i32, i32
  }
  func.func @transform_3(%arg0: i32) -> (i32, i32) {
    %c0_i32 = arith.constant 0 : i32
    %c0_i32_0 = arith.constant 0 : i32
    return %arg0, %c0_i32 : i32, i32
  }
}

</mosaic_0001>

<llo_original>
// kernel: tpu_custom_call.1
$region0: #{tpu_custom_call.1}
  #allocation0 [shape = 'u32[]', space=smem, size = 0x4, offset = 0x4, fixed_abs, tag = 'smem constant byte address 0x4 - core index']
  #allocation1 [shape = 'u32[144,128]{1,0:T(1,128)}', space=vmem, size = 0x12000, scoped, tag = 'internal scratch']
  %s0 = inlined_call_operand.hbm [shape: bf16[16,256], index: 0, kind: input, shape index: {}]
  %s1 = inlined_call_operand.vmem [shape: bf16[1,256], index: 1, kind: input, shape index: {}]
  %s2 = inlined_call_operand.vmem [shape: bf16[1,256], index: 2, kind: input, shape index: {}]
  %s3 = inlined_call_operand.hbm [shape: bf16[16,256], index: 3, kind: output, shape index: {}]
  %s4 = sld [smem:[#allocation0]]
  $region26: #{tpu_custom_call.1} parent=0
    _
  %s6 = ssub.s32 1, %s4
  %s7 = scalar_select 0, %s6, %s4
  $region1: #{tpu_custom_call.1} parent=0
    #allocation2 [shape = 'u8[8192]{0}', space=vmem, size = 0x2000, scoped, tag = 'input window, operand 0, single buffered']
    #allocation3 [shape = 's32[1]{0}', space=sflag, size = 0x4, scoped, tag = 'scoped memory for tpu_custom_call.1']
    #allocation4 [shape = 's32[1]{0}', space=sflag, size = 0x4, scoped, tag = 'scoped memory for tpu_custom_call.1']
    #allocation5 [shape = 'u8[8192]{0}', space=vmem, size = 0x2000, scoped, tag = 'output window, operand 0, single buffered']
    %8 = vsyncpa [#allocation3], 0
    %9 = vsyncpa [#allocation4], 0
    // Predicated region
    $region2: #{tpu_custom_call.1} parent=1 // pred_check
      _
    $region3: #{tpu_custom_call.1} parent=1 // pred_check_branch
      %11 = sbr.rel (0) target = $region5
    $region4: #{tpu_custom_call.1} parent=1 // pred_region
      %s13 = ssub.s32 256, 256
      %14 = vsyncadd [#allocation3], %s13
      %s15 = sshll.u32 [#allocation2], 4
      %s16 = int_to_ptr.vmem [resolvable:$true] %s15
      %21 = dma.hbm_to_vmem [thread:$0]  %s0, 256, %s16, [#allocation3], 128, 128, 8
    $region5: #{tpu_custom_call.1} parent=1 // pred_fallthru
      _
    // Predicated region
    $region6: #{tpu_custom_call.1} parent=1 // pred_check
      _
    $region7: #{tpu_custom_call.1} parent=1 // pred_check_branch
      %23 = sbr.rel (0) target = $region9
    $region8: #{tpu_custom_call.1} parent=1 // pred_region
      _
    $region9: #{tpu_custom_call.1} parent=1 // pred_fallthru
      _
    // Predicated region
    $region10: #{tpu_custom_call.1} parent=1 // pred_check
      _
    $region11: #{tpu_custom_call.1} parent=1 // pred_check_branch
      %25 = sbr.rel (0) target = $region13
    $region12: #{tpu_custom_call.1} parent=1 // pred_region
      _
    $region13: #{tpu_custom_call.1} parent=1 // pred_fallthru
      _
    // Predicated region
    $region14: #{tpu_custom_call.1} parent=1 // pred_check
      _
    $region15: #{tpu_custom_call.1} parent=1 // pred_check_branch
      %27 = sbr.rel (0) target = $region17
    $region16: #{tpu_custom_call.1} parent=1 // pred_region
      %28 = dma.done [#allocation3], 256
    $region17: #{tpu_custom_call.1} parent=1 // pred_fallthru
      _
    %v29 = vld [vmem:[#allocation2] sm:$0xff]
    %v30 = vld [vmem:[#allocation2 + $0x8] sm:$0xff]
    %v31 = vunpack.c.l.bf16 %v29
    %v32 = vunpack.c.h.bf16 %v29
    %v33 = vunpack.c.l.bf16 %v30
    %v34 = vunpack.c.h.bf16 %v30
    %v35 = vadd.f32 %v31, %v32
    %36 = vadd.xlane.f32.xlu0 %v35
    %v37 = vpop.xlane.xlu0 %36
    %v38 = vadd.f32 %v33, %v34
    %39 = vadd.xlane.f32.xlu0 %v38
    %v40 = vpop.xlane.xlu0 %39
    %v41 = vrcp.pop 256.0
    %v42 = vmul.f32 %v37, %v41
    %v43 = vmul.f32 %v40, %v41
    %v44 = vsub.f32 %v31, %v42
    %v45 = vsub.f32 %v32, %v42
    %v46 = vsub.f32 %v33, %v43
    %v47 = vsub.f32 %v34, %v43
    %v48 = vmul.f32 %v44, %v44
    %v49 = vmul.f32 %v45, %v45
    %v50 = vmul.f32 %v46, %v46
    %v51 = vmul.f32 %v47, %v47
    %v52 = vadd.f32 %v48, %v49
    %53 = vadd.xlane.f32.xlu0 %v52
    %v54 = vpop.xlane.xlu0 %53
    %v55 = vadd.f32 %v50, %v51
    %56 = vadd.xlane.f32.xlu0 %v55
    %v57 = vpop.xlane.xlu0 %56
    %v58 = vmul.f32 %v54, %v41
    %v59 = vmul.f32 %v57, %v41
    %v60 = vadd.f32 %v58, 1e-05
    %v61 = vadd.f32 %v59, 1e-05
    %v62 = vrsqrt.pop %v60
    %v63 = vrsqrt.pop %v61
    %v64 = vmul.f32 %v44, %v62
    %v65 = vmul.f32 %v45, %v62
    %v66 = vmul.f32 %v46, %v63
    %v67 = vmul.f32 %v47, %v63
    %v68 = vld [vmem:[%s1] sm:$0x3]
    %v69 = vunpack.c.l.bf16 %v68
    %v71 = vlaneseq
    %v72 = vshrl.u32 %v71, 7
    %v73 = vsub.s32 0, %v72
    %v74 = vrot.slane %v69, %v73
    %v75 = vlaneseq
    %v76 = vshrl.u32 %v75, 7
    %v77 = vsub.s32 2, %v76
    %v78 = vrot.slane %v69, %v77
    %v81 = vlaneseq
    %v82 = vshrl.u32 %v81, 7
    %v83 = vsub.s32 0, %v82
    %v84 = vrot.slane %v74, %v83
    %v85 = vlaneseq
    %v86 = vshrl.u32 %v85, 7
    %v87 = vsub.s32 0, %v86
    %v88 = vrot.slane %v78, %v87
    %v89 = vmul.f32 %v64, %v84
    %v90 = vmul.f32 %v65, %v88
    %v91 = vmul.f32 %v66, %v84
    %v92 = vmul.f32 %v67, %v88
    %v93 = vld [vmem:[%s2] sm:$0x3]
    %v94 = vunpack.c.l.bf16 %v93
    %v96 = vlaneseq
    %v97 = vshrl.u32 %v96, 7
    %v98 = vsub.s32 0, %v97
    %v99 = vrot.slane %v94, %v98
    %v100 = vlaneseq
    %v101 = vshrl.u32 %v100, 7
    %v102 = vsub.s32 2, %v101
    %v103 = vrot.slane %v94, %v102
    %v106 = vlaneseq
    %v107 = vshrl.u32 %v106, 7
    %v108 = vsub.s32 0, %v107
    %v109 = vrot.slane %v99, %v108
    %v110 = vlaneseq
    %v111 = vshrl.u32 %v110, 7
    %v112 = vsub.s32 0, %v111
    %v113 = vrot.slane %v103, %v112
    %v114 = vadd.f32 %v89, %v109
    %v115 = vadd.f32 %v90, %v113
    %v116 = vadd.f32 %v91, %v109
    %v117 = vadd.f32 %v92, %v113
    %v118 = vpack.c.bf16 %v116, %v114
    %v119 = vpack.c.bf16 %v117, %v115
    %v122 = vunpack.c.l.b16 %v118
    %v123 = vunpack.c.l.b16 %v119
    %v124 = vunpack.c.h.b16 %v118
    %v125 = vunpack.c.h.b16 %v119
    %v126 = vpack.c.b16 %v123, %v122
    %v127 = vpack.c.b16 %v125, %v124
    %130 = vst [vmem:[#allocation5] sm:$0xff] %v126
    %131 = vst [vmem:[#allocation5 + $0x8] sm:$0xff] %v127
    // Predicated region
    $region18: #{tpu_custom_call.1} parent=1 // pred_check
      _
    $region19: #{tpu_custom_call.1} parent=1 // pred_check_branch
      %133 = sbr.rel (0) target = $region21
    $region20: #{tpu_custom_call.1} parent=1 // pred_region
      %s135 = ssub.s32 256, 256
      %136 = vsyncadd [#allocation4], %s135
      %s137 = sshll.u32 [#allocation5], 4
      %s138 = int_to_ptr.vmem [resolvable:$true] %s137
      %143 = dma.vmem_to_hbm [thread:$0]  %s138, 256, %s3, [#allocation4], 128, 128, 8
    $region21: #{tpu_custom_call.1} parent=1 // pred_fallthru
      _
    // Predicated region
    $region22: #{tpu_custom_call.1} parent=1 // pred_check
      _
    $region23: #{tpu_custom_call.1} parent=1 // pred_check_branch
      %145 = sbr.rel (0) target = $region25
    $region24: #{tpu_custom_call.1} parent=1 // pred_region
      %146 = dma.done [#allocation4], 256
    $region25: #{tpu_custom_call.1} parent=1 // pred_fallthru
      _
    %147 = vsyncpa [#allocation3], 1
    %148 = vsyncpa [#allocation4], 1

</llo_original>
